<compile_context>
chip_gen: v7x
topology: tpu7x:2x2x1
jax: 0.10.0
libtpu: 0.0.40
codegen_flags: <defaults>
</compile_context>

<pallas_src>
from functools import partial

import jax
import jax.numpy as jnp
from jax.experimental import pallas as pl
from jax.experimental.pallas import tpu as pltpu

# TODO(synk): the reference file uses a global `eps` that is never defined in
# the snippet; 1e-6 is assumed here (common choice in B-cos implementations).
EPS = 1e-6
LN_EPS = 1e-5  # torch.nn.LayerNorm default eps


# ---------------------------------------------------------------------------
# In-kernel helper (traced inside the Pallas body)
# ---------------------------------------------------------------------------
def _bcos(p_in, gamma, beta, inv_scale, b=2):
    """BCos module forward (max_out == 1, f32 math).

    F.avg_pool1d(kernel=1, stride=1, pad=0) on a (B, 1) tensor is an identity,
    so the norm is just sqrt(sum(p**2, axis=1) + eps).  All divisions are
    expressed as rsqrt / constant multiplies so they land on the EUP slot.
    """
    # torch LayerNorm: biased variance, eps inside the sqrt.
    mean = jnp.mean(p_in, axis=-1, keepdims=True)
    var = jnp.mean((p_in - mean) ** 2, axis=-1, keepdims=True)
    p = (p_in - mean) * jax.lax.rsqrt(var + LN_EPS) * gamma + beta

    inv_norm = jax.lax.rsqrt(jnp.sum(p * p, axis=1, keepdims=True) + EPS)
    abs_cos = jnp.abs(p * inv_norm) + EPS
    if b == 2:                       # special-case: no pow lowering
        powed = abs_cos
    else:
        powed = abs_cos ** (b - 1)
    return p * powed * inv_scale


def bcos_attention_kernel(x_ref, wq_ref, wk_ref, params_ref, out_ref,
                          *, inv_scale_bcos):
    x = x_ref[...]                                # (B, D), native dtype (MXU operand)
    xf = x.astype(jnp.float32)                    # f32 copy for VPU/EUP math
    wq = wq_ref[...]                              # (D, hd)
    wk = wk_ref[...]                              # (D, hd)
    params = params_ref[...].astype(jnp.float32)  # (4, D)
    gv = params[0:1, :]
    bv = params[1:2, :]
    gu = params[2:3, :]
    bu = params[3:4, :]

    # q/k projections (torch Linear, no bias): y = x @ W^T, W pre-transposed.
    # The V projection is dead code in the reference forward and is skipped.
    q = jnp.dot(x, wq, preferred_element_type=jnp.float32)       # (B, hd)
    k = jnp.dot(x, wk, preferred_element_type=jnp.float32)       # (B, hd)

    # Wv(x)
    wvp = _bcos(xf, gv, bv, inv_scale_bcos)                       # (B, D)

    # attention over the batch axis: softmax(q @ k^T)
    # (no 1/sqrt(dim_head) scale — matches the reference forward exactly)
    logits = jax.lax.dot_general(q, k, (((1,), (1,)), ((), ())),
                                 preferred_element_type=jnp.float32)  # (B, B)
    m = jnp.max(logits, axis=-1, keepdims=True)
    e = jnp.exp(logits - m)
    inv_den = pl.reciprocal(jnp.sum(e, axis=-1, keepdims=True), approx=True)
    ah = e * inv_den

    x_ = jnp.dot(ah, wvp, preferred_element_type=jnp.float32)     # (B, D)

    # Wu(x_)
    wvu = _bcos(x_, gu, bu, inv_scale_bcos)                       # (B, D)

    # (wvu @ x_^T) @ x
    t = jax.lax.dot_general(wvu, x_, (((1,), (1,)), ((), ())),
                            preferred_element_type=jnp.float32)   # (B, B)
    out = jnp.dot(t, x, preferred_element_type=jnp.float32)       # (B, D)

    # final per-row normalisation (avg_pool1d(kernel=1) is again an identity)
    inv_norm = jax.lax.rsqrt(jnp.sum(out * out, axis=1, keepdims=True) + EPS)
    out_ref[...] = jnp.abs(out * inv_norm) + EPS


# ---------------------------------------------------------------------------
# Wrapper
# ---------------------------------------------------------------------------
def bcos_attention(x, wqkv, gamma_v, beta_v, gamma_u, beta_u,
                   num_heads, dim_head):
    B, D = x.shape
    hd = num_heads * dim_head
    assert wqkv.shape == (D, 3 * hd)
    scale_bcos = D ** 0.5 / 100.0      # BCos default: dim**0.5 / scale_fact
    inv_scale_bcos = 1.0 / scale_bcos

    # Drop the unused V weight columns; ship Q and K weights separately so the
    # kernel never slices lanes.
    wq = wqkv[:, :hd]
    wk = wqkv[:, hd:2 * hd]

    # Fuse the four (D,) LayerNorm params into one (4, D) operand / one DMA.
    params = jnp.stack([gamma_v, beta_v, gamma_u, beta_u], axis=0)

    kernel = partial(bcos_attention_kernel, inv_scale_bcos=inv_scale_bcos)

    vmem = pltpu.MemorySpace.VMEM
    return pl.pallas_call(
        kernel,
        out_shape=jax.ShapeDtypeStruct((B, D), jnp.float32),
        in_specs=[pl.BlockSpec(memory_space=vmem)] * 4,
        out_specs=pl.BlockSpec(memory_space=vmem),
    )(x, wq, wk, params)


# ---------------------------------------------------------------------------
# Pure-JAX reference (mirrors the PyTorch forward) for validation
# ---------------------------------------------------------------------------
def _bcos_ref(x, gamma, beta, scale, b=2):
    mean = jnp.mean(x, axis=-1, keepdims=True)
    var = jnp.mean((x - mean) ** 2, axis=-1, keepdims=True)
    p = (x - mean) / jnp.sqrt(var + LN_EPS) * gamma + beta
    norm = jnp.sqrt(jnp.sum(p ** 2, axis=1, keepdims=True) + EPS)
    abs_cos = jnp.abs(p / norm) + EPS
    return p * abs_cos ** (b - 1) / scale


def bcos_attention_ref(x, wqkv, gamma_v, beta_v, gamma_u, beta_u,
                       num_heads, dim_head):
    B, D = x.shape
    hd = num_heads * dim_head
    scale_bcos = D ** 0.5 / 100.0
    qkv = x @ wqkv
    q, k, _v = qkv[:, :hd], qkv[:, hd:2 * hd], qkv[:, 2 * hd:]
    wvp = _bcos_ref(x, gamma_v, beta_v, scale_bcos)
    ah = jax.nn.softmax(q @ k.T, axis=-1)
    x_ = ah @ wvp
    wvu = _bcos_ref(x_, gamma_u, beta_u, scale_bcos)
    out = (wvu @ x_.T) @ x
    norm = jnp.sqrt(jnp.sum(out ** 2, axis=1, keepdims=True) + EPS)
    return jnp.abs(out / norm) + EPS


# ---------------------------------------------------------------------------
if __name__ == "__main__":
    B = 8             # batch ("sequence" over which the attention matrix is built)
    D = 128           # dim
    NUM_HEADS = 2
    DIM_HEAD = 64
    HD = NUM_HEADS * DIM_HEAD

    key = jax.random.PRNGKey(0)
    kx, kw, kgv, kbv, kgu, kbu = jax.random.split(key, 6)

    x = jax.random.normal(kx, (B, D), dtype=jnp.float32)
    # qkv weight stored pre-transposed: (D, 3*H*Dh)
    wqkv = jax.random.normal(kw, (D, 3 * HD), dtype=jnp.float32) * (D ** -0.5)
    gamma_v = 1.0 + 0.05 * jax.random.normal(kgv, (D,), dtype=jnp.float32)
    beta_v = 0.02 * jax.random.normal(kbv, (D,), dtype=jnp.float32)
    gamma_u = 1.0 + 0.05 * jax.random.normal(kgu, (D,), dtype=jnp.float32)
    beta_u = 0.02 * jax.random.normal(kbu, (D,), dtype=jnp.float32)

    out = bcos_attention(x, wqkv, gamma_v, beta_v, gamma_u, beta_u,
                         NUM_HEADS, DIM_HEAD)
    out = jax.block_until_ready(out)

    ref = bcos_attention_ref(x, wqkv, gamma_v, beta_v, gamma_u, beta_u,
                             NUM_HEADS, DIM_HEAD)
    ref = jax.block_until_ready(ref)

    assert out.shape == (B, D)
    # tolerance loosened slightly (2e-3) to absorb the EUP approximate
    # reciprocal used for the softmax denominator.
    assert jnp.allclose(out, ref, rtol=2e-3, atol=2e-3), (
        f"max abs err {jnp.max(jnp.abs(out - ref))}")

    print("KERNEL_OK")
</pallas_src>

<mosaic_0001>
module attributes {stable_mosaic.version = 11 : i64} {
  func.func @bcos_attention_kernel(%arg0: memref<8x128xf32, #tpu.memory_space<vmem>>, %arg1: memref<128x128xf32, #tpu.memory_space<vmem>>, %arg2: memref<128x128xf32, #tpu.memory_space<vmem>>, %arg3: memref<4x128xf32, #tpu.memory_space<vmem>>, %arg4: memref<8x128xf32, #tpu.memory_space<vmem>>) attributes {dimension_semantics = [], scalar_prefetch = 0 : i64, scratch_operands = 0 : i64, tpu.core_type = #tpu.core_type<tc>} {
    %c0 = arith.constant 0 : index
    %c0_0 = arith.constant 0 : index
    %0 = vector.load %arg0[%c0, %c0_0] : memref<8x128xf32, #tpu.memory_space<vmem>>, vector<8x128xf32>
    %c0_1 = arith.constant 0 : index
    %c0_2 = arith.constant 0 : index
    %1 = vector.load %arg1[%c0_1, %c0_2] : memref<128x128xf32, #tpu.memory_space<vmem>>, vector<128x128xf32>
    %c0_3 = arith.constant 0 : index
    %c0_4 = arith.constant 0 : index
    %2 = vector.load %arg2[%c0_3, %c0_4] : memref<128x128xf32, #tpu.memory_space<vmem>>, vector<128x128xf32>
    %c0_5 = arith.constant 0 : index
    %c0_6 = arith.constant 0 : index
    %3 = vector.load %arg3[%c0_5, %c0_6] : memref<4x128xf32, #tpu.memory_space<vmem>>, vector<4x128xf32>
    %4 = vector.extract_strided_slice %3 {offsets = [0, 0], sizes = [1, 128], strides = [1, 1]} : vector<4x128xf32> to vector<1x128xf32>
    %5 = vector.extract_strided_slice %3 {offsets = [1, 0], sizes = [1, 128], strides = [1, 1]} : vector<4x128xf32> to vector<1x128xf32>
    %6 = vector.extract_strided_slice %3 {offsets = [2, 0], sizes = [1, 128], strides = [1, 1]} : vector<4x128xf32> to vector<1x128xf32>
    %7 = vector.extract_strided_slice %3 {offsets = [3, 0], sizes = [1, 128], strides = [1, 1]} : vector<4x128xf32> to vector<1x128xf32>
    %cst = arith.constant dense<0.000000e+00> : vector<8x128xf32>
    %8 = tpu.matmul %0, %1, %cst {dimension_numbers = #tpu.dot_dimension_numbers<[1], [0], [0], [1], [0, 0, 1, 1], [], []>} : vector<8x128xf32>, vector<128x128xf32>, vector<8x128xf32> -> vector<8x128xf32>
    %cst_7 = arith.constant dense<0.000000e+00> : vector<8x128xf32>
    %9 = tpu.matmul %0, %2, %cst_7 {dimension_numbers = #tpu.dot_dimension_numbers<[1], [0], [0], [1], [0, 0, 1, 1], [], []>} : vector<8x128xf32>, vector<128x128xf32>, vector<8x128xf32> -> vector<8x128xf32>
    %cst_8 = arith.constant dense<0.000000e+00> : vector<8xf32>
    %10 = vector.multi_reduction <add>, %0, %cst_8 [1] : vector<8x128xf32> to vector<8xf32>
    %11 = vector.shape_cast %10 : vector<8xf32> to vector<8x1xf32>
    %cst_9 = arith.constant 1.280000e+02 : f32
    %12 = vector.broadcast %cst_9 : f32 to vector<8x1xf32>
    %13 = arith.divf %11, %12 : vector<8x1xf32>
    %14 = vector.broadcast %13 : vector<8x1xf32> to vector<8x128xf32>
    %15 = arith.subf %0, %14 : vector<8x128xf32>
    %16 = arith.mulf %15, %15 : vector<8x128xf32>
    %cst_10 = arith.constant dense<0.000000e+00> : vector<8xf32>
    %17 = vector.multi_reduction <add>, %16, %cst_10 [1] : vector<8x128xf32> to vector<8xf32>
    %18 = vector.shape_cast %17 : vector<8xf32> to vector<8x1xf32>
    %cst_11 = arith.constant 1.280000e+02 : f32
    %19 = vector.broadcast %cst_11 : f32 to vector<8x1xf32>
    %20 = arith.divf %18, %19 : vector<8x1xf32>
    %21 = vector.broadcast %13 : vector<8x1xf32> to vector<8x128xf32>
    %22 = arith.subf %0, %21 : vector<8x128xf32>
    %cst_12 = arith.constant 9.99999974E-6 : f32
    %23 = vector.broadcast %cst_12 : f32 to vector<8x1xf32>
    %24 = arith.addf %20, %23 : vector<8x1xf32>
    %25 = math.rsqrt %24 : vector<8x1xf32>
    %26 = vector.broadcast %25 : vector<8x1xf32> to vector<8x128xf32>
    %27 = arith.mulf %22, %26 : vector<8x128xf32>
    %28 = vector.broadcast %4 : vector<1x128xf32> to vector<8x128xf32>
    %29 = arith.mulf %27, %28 : vector<8x128xf32>
    %30 = vector.broadcast %5 : vector<1x128xf32> to vector<8x128xf32>
    %31 = arith.addf %29, %30 : vector<8x128xf32>
    %32 = arith.mulf %31, %31 : vector<8x128xf32>
    %cst_13 = arith.constant dense<0.000000e+00> : vector<8xf32>
    %33 = vector.multi_reduction <add>, %32, %cst_13 [1] : vector<8x128xf32> to vector<8xf32>
    %34 = vector.shape_cast %33 : vector<8xf32> to vector<8x1xf32>
    %cst_14 = arith.constant 9.99999997E-7 : f32
    %35 = vector.broadcast %cst_14 : f32 to vector<8x1xf32>
    %36 = arith.addf %34, %35 : vector<8x1xf32>
    %37 = math.rsqrt %36 : vector<8x1xf32>
    %38 = vector.broadcast %37 : vector<8x1xf32> to vector<8x128xf32>
    %39 = arith.mulf %31, %38 : vector<8x128xf32>
    %40 = math.absf %39 : vector<8x128xf32>
    %cst_15 = arith.constant 9.99999997E-7 : f32
    %41 = vector.broadcast %cst_15 : f32 to vector<8x128xf32>
    %42 = arith.addf %40, %41 : vector<8x128xf32>
    %43 = arith.mulf %31, %42 : vector<8x128xf32>
    %cst_16 = arith.constant 8.83883476 : f32
    %44 = vector.broadcast %cst_16 : f32 to vector<8x128xf32>
    %45 = arith.mulf %43, %44 : vector<8x128xf32>
    %cst_17 = arith.constant dense<0.000000e+00> : vector<8x8xf32>
    %46 = tpu.matmul %8, %9, %cst_17 {dimension_numbers = #tpu.dot_dimension_numbers<[1], [1], [0], [0], [0, 0, 1, 0], [], []>} : vector<8x128xf32>, vector<8x128xf32>, vector<8x8xf32> -> vector<8x8xf32>
    %cst_18 = arith.constant dense<0xFF800000> : vector<8xf32>
    %47 = vector.multi_reduction <maximumf>, %46, %cst_18 [1] : vector<8x8xf32> to vector<8xf32>
    %48 = vector.shape_cast %47 : vector<8xf32> to vector<8x1xf32>
    %49 = vector.broadcast %48 : vector<8x1xf32> to vector<8x8xf32>
    %50 = arith.subf %46, %49 : vector<8x8xf32>
    %51 = math.exp %50 : vector<8x8xf32>
    %cst_19 = arith.constant dense<0.000000e+00> : vector<8xf32>
    %52 = vector.multi_reduction <add>, %51, %cst_19 [1] : vector<8x8xf32> to vector<8xf32>
    %53 = vector.shape_cast %52 : vector<8xf32> to vector<8x1xf32>
    %54 = tpu.reciprocal %53 {approx = true} : vector<8x1xf32> -> vector<8x1xf32>
    %55 = vector.broadcast %54 : vector<8x1xf32> to vector<8x8xf32>
    %56 = arith.mulf %51, %55 : vector<8x8xf32>
    %cst_20 = arith.constant dense<0.000000e+00> : vector<8x128xf32>
    %57 = tpu.matmul %56, %45, %cst_20 {dimension_numbers = #tpu.dot_dimension_numbers<[1], [0], [0], [1], [0, 0, 1, 1], [], []>} : vector<8x8xf32>, vector<8x128xf32>, vector<8x128xf32> -> vector<8x128xf32>
    %cst_21 = arith.constant dense<0.000000e+00> : vector<8xf32>
    %58 = vector.multi_reduction <add>, %57, %cst_21 [1] : vector<8x128xf32> to vector<8xf32>
    %59 = vector.shape_cast %58 : vector<8xf32> to vector<8x1xf32>
    %cst_22 = arith.constant 1.280000e+02 : f32
    %60 = vector.broadcast %cst_22 : f32 to vector<8x1xf32>
    %61 = arith.divf %59, %60 : vector<8x1xf32>
    %62 = vector.broadcast %61 : vector<8x1xf32> to vector<8x128xf32>
    %63 = arith.subf %57, %62 : vector<8x128xf32>
    %64 = arith.mulf %63, %63 : vector<8x128xf32>
    %cst_23 = arith.constant dense<0.000000e+00> : vector<8xf32>
    %65 = vector.multi_reduction <add>, %64, %cst_23 [1] : vector<8x128xf32> to vector<8xf32>
    %66 = vector.shape_cast %65 : vector<8xf32> to vector<8x1xf32>
    %cst_24 = arith.constant 1.280000e+02 : f32
    %67 = vector.broadcast %cst_24 : f32 to vector<8x1xf32>
    %68 = arith.divf %66, %67 : vector<8x1xf32>
    %69 = vector.broadcast %61 : vector<8x1xf32> to vector<8x128xf32>
    %70 = arith.subf %57, %69 : vector<8x128xf32>
    %cst_25 = arith.constant 9.99999974E-6 : f32
    %71 = vector.broadcast %cst_25 : f32 to vector<8x1xf32>
    %72 = arith.addf %68, %71 : vector<8x1xf32>
    %73 = math.rsqrt %72 : vector<8x1xf32>
    %74 = vector.broadcast %73 : vector<8x1xf32> to vector<8x128xf32>
    %75 = arith.mulf %70, %74 : vector<8x128xf32>
    %76 = vector.broadcast %6 : vector<1x128xf32> to vector<8x128xf32>
    %77 = arith.mulf %75, %76 : vector<8x128xf32>
    %78 = vector.broadcast %7 : vector<1x128xf32> to vector<8x128xf32>
    %79 = arith.addf %77, %78 : vector<8x128xf32>
    %80 = arith.mulf %79, %79 : vector<8x128xf32>
    %cst_26 = arith.constant dense<0.000000e+00> : vector<8xf32>
    %81 = vector.multi_reduction <add>, %80, %cst_26 [1] : vector<8x128xf32> to vector<8xf32>
    %82 = vector.shape_cast %81 : vector<8xf32> to vector<8x1xf32>
    %cst_27 = arith.constant 9.99999997E-7 : f32
    %83 = vector.broadcast %cst_27 : f32 to vector<8x1xf32>
    %84 = arith.addf %82, %83 : vector<8x1xf32>
    %85 = math.rsqrt %84 : vector<8x1xf32>
    %86 = vector.broadcast %85 : vector<8x1xf32> to vector<8x128xf32>
    %87 = arith.mulf %79, %86 : vector<8x128xf32>
    %88 = math.absf %87 : vector<8x128xf32>
    %cst_28 = arith.constant 9.99999997E-7 : f32
    %89 = vector.broadcast %cst_28 : f32 to vector<8x128xf32>
    %90 = arith.addf %88, %89 : vector<8x128xf32>
    %91 = arith.mulf %79, %90 : vector<8x128xf32>
    %cst_29 = arith.constant 8.83883476 : f32
    %92 = vector.broadcast %cst_29 : f32 to vector<8x128xf32>
    %93 = arith.mulf %91, %92 : vector<8x128xf32>
    %cst_30 = arith.constant dense<0.000000e+00> : vector<8x8xf32>
    %94 = tpu.matmul %93, %57, %cst_30 {dimension_numbers = #tpu.dot_dimension_numbers<[1], [1], [0], [0], [0, 0, 1, 0], [], []>} : vector<8x128xf32>, vector<8x128xf32>, vector<8x8xf32> -> vector<8x8xf32>
    %cst_31 = arith.constant dense<0.000000e+00> : vector<8x128xf32>
    %95 = tpu.matmul %94, %0, %cst_31 {dimension_numbers = #tpu.dot_dimension_numbers<[1], [0], [0], [1], [0, 0, 1, 1], [], []>} : vector<8x8xf32>, vector<8x128xf32>, vector<8x128xf32> -> vector<8x128xf32>
    %96 = arith.mulf %95, %95 : vector<8x128xf32>
    %cst_32 = arith.constant dense<0.000000e+00> : vector<8xf32>
    %97 = vector.multi_reduction <add>, %96, %cst_32 [1] : vector<8x128xf32> to vector<8xf32>
    %98 = vector.shape_cast %97 : vector<8xf32> to vector<8x1xf32>
    %cst_33 = arith.constant 9.99999997E-7 : f32
    %99 = vector.broadcast %cst_33 : f32 to vector<8x1xf32>
    %100 = arith.addf %98, %99 : vector<8x1xf32>
    %101 = math.rsqrt %100 : vector<8x1xf32>
    %102 = vector.broadcast %101 : vector<8x1xf32> to vector<8x128xf32>
    %103 = arith.mulf %95, %102 : vector<8x128xf32>
    %104 = math.absf %103 : vector<8x128xf32>
    %cst_34 = arith.constant 9.99999997E-7 : f32
    %105 = vector.broadcast %cst_34 : f32 to vector<8x128xf32>
    %106 = arith.addf %104, %105 : vector<8x128xf32>
    %c0_35 = arith.constant 0 : index
    %c0_36 = arith.constant 0 : index
    %107 = vector.load %arg4[%c0_35, %c0_36] : memref<8x128xf32, #tpu.memory_space<vmem>>, vector<8x128xf32>
    tpu.vector_store %arg4[%c0_35, %c0_36], %106 {strides = array<i32>} : memref<8x128xf32, #tpu.memory_space<vmem>>, vector<8x128xf32>,
    return
  }
}

</mosaic_0001>

<llo_original>
// kernel: tpu_custom_call.1
$region0: #{tpu_custom_call.1}
  #allocation0 [shape = 'u32[]', space=smem, size = 0x4, offset = 0x4, fixed_abs, tag = 'smem constant byte address 0x4 - core index']
  #allocation1 [shape = 'u32[144,128]{1,0:T(1,128)}', space=vmem, size = 0x12000, scoped, tag = 'internal scratch']
  %s0 = inlined_call_operand.hbm [shape: f32[8,128], index: 0, kind: input, shape index: {}]
  %s1 = inlined_call_operand.hbm [shape: f32[128,128], index: 1, kind: input, shape index: {}]
  %s2 = inlined_call_operand.hbm [shape: f32[128,128], index: 2, kind: input, shape index: {}]
  %s3 = inlined_call_operand.vmem [shape: f32[4,128], index: 3, kind: input, shape index: {}]
  %s4 = inlined_call_operand.hbm [shape: f32[8,128], index: 4, kind: output, shape index: {}]
  %s5 = sld [smem:[#allocation0]]
  $region38: #{tpu_custom_call.1} parent=0
    _
  %s7 = ssub.s32 1, %s5
  %s8 = scalar_select 0, %s7, %s5
  $region1: #{tpu_custom_call.1} parent=0
    #allocation2 [shape = 'u8[4096]{0}', space=vmem, size = 0x1000, scoped, tag = 'input window, operand 0, single buffered']
    #allocation3 [shape = 's32[1]{0}', space=sflag, size = 0x4, scoped, tag = 'scoped memory for tpu_custom_call.1']
    #allocation4 [shape = 's32[1]{0}', space=sflag, size = 0x4, scoped, tag = 'scoped memory for tpu_custom_call.1']
    #allocation5 [shape = 'u8[65536]{0}', space=vmem, size = 0x10000, scoped, tag = 'input window, operand 1, single buffered']
    #allocation6 [shape = 's32[1]{0}', space=sflag, size = 0x4, scoped, tag = 'scoped memory for tpu_custom_call.1']
    #allocation7 [shape = 'u8[65536]{0}', space=vmem, size = 0x10000, scoped, tag = 'input window, operand 2, single buffered']
    #allocation8 [shape = 'u8[4096]{0}', space=vmem, size = 0x1000, scoped, tag = 'output window, operand 0, single buffered']
    %9 = vsyncpa [#allocation3], 0
    %10 = vsyncpa [#allocation6], 0
    %11 = vsyncpa [#allocation4], 0
    // Predicated region
    $region2: #{tpu_custom_call.1} parent=1 // pred_check
      _
    $region3: #{tpu_custom_call.1} parent=1 // pred_check_branch
      %13 = sbr.rel (0) target = $region5
    $region4: #{tpu_custom_call.1} parent=1 // pred_region
      %s15 = ssub.s32 128, 128
      %16 = vsyncadd [#allocation3], %s15
      %s18 = sshll.u32 [#allocation2], 4
      %s19 = int_to_ptr.vmem [resolvable:$true] %s18
      %21 = dma.hbm_to_vmem [thread:$0]  %s0, 128, %s19, [#allocation3]
    $region5: #{tpu_custom_call.1} parent=1 // pred_fallthru
      _
    // Predicated region
    $region6: #{tpu_custom_call.1} parent=1 // pred_check
      _
    $region7: #{tpu_custom_call.1} parent=1 // pred_check_branch
      %23 = sbr.rel (0) target = $region9
    $region8: #{tpu_custom_call.1} parent=1 // pred_region
      %s25 = ssub.s32 2048, 2048
      %26 = vsyncadd [#allocation6], %s25
      %s27 = sshll.u32 [#allocation5], 4
      %s28 = int_to_ptr.vmem [resolvable:$true] %s27
      %33 = dma.hbm_to_vmem [thread:$0]  %s1, 2048, %s28, [#allocation6], 128, 128, 8
    $region9: #{tpu_custom_call.1} parent=1 // pred_fallthru
      _
    // Predicated region
    $region10: #{tpu_custom_call.1} parent=1 // pred_check
      _
    $region11: #{tpu_custom_call.1} parent=1 // pred_check_branch
      %35 = sbr.rel (0) target = $region13
    $region12: #{tpu_custom_call.1} parent=1 // pred_region
      %s37 = ssub.s32 2048, 2048
      %38 = vsyncadd [#allocation6], %s37
      %s39 = sshll.u32 [#allocation7], 4
      %s40 = int_to_ptr.vmem [resolvable:$true] %s39
      %45 = dma.hbm_to_vmem [thread:$0]  %s2, 2048, %s40, [#allocation6], 128, 128, 8
    $region13: #{tpu_custom_call.1} parent=1 // pred_fallthru
      _
    // Predicated region
    $region14: #{tpu_custom_call.1} parent=1 // pred_check
      _
    $region15: #{tpu_custom_call.1} parent=1 // pred_check_branch
      %47 = sbr.rel (0) target = $region17
    $region16: #{tpu_custom_call.1} parent=1 // pred_region
      _
    $region17: #{tpu_custom_call.1} parent=1 // pred_fallthru
      _
    // Predicated region
    $region18: #{tpu_custom_call.1} parent=1 // pred_check
      _
    $region19: #{tpu_custom_call.1} parent=1 // pred_check_branch
      %49 = sbr.rel (0) target = $region21
    $region20: #{tpu_custom_call.1} parent=1 // pred_region
      %50 = dma.done [#allocation3], 128
    $region21: #{tpu_custom_call.1} parent=1 // pred_fallthru
      _
    // Predicated region
    $region22: #{tpu_custom_call.1} parent=1 // pred_check
      _
    $region23: #{tpu_custom_call.1} parent=1 // pred_check_branch
      %52 = sbr.rel (0) target = $region25
    $region24: #{tpu_custom_call.1} parent=1 // pred_region
      %53 = dma.done [#allocation6], 2048
    $region25: #{tpu_custom_call.1} parent=1 // pred_fallthru
      _
    // Predicated region
    $region26: #{tpu_custom_call.1} parent=1 // pred_check
      _
    $region27: #{tpu_custom_call.1} parent=1 // pred_check_branch
      %55 = sbr.rel (0) target = $region29
    $region28: #{tpu_custom_call.1} parent=1 // pred_region
      %56 = dma.done [#allocation6], 2048
    $region29: #{tpu_custom_call.1} parent=1 // pred_fallthru
      _
    %v57 = vld [vmem:[#allocation2] sm:$0xff]
    %v58 = vld [vmem:[#allocation5] sm:$0xff]
    %v59 = vld [vmem:[#allocation5 + $0x8] sm:$0xff]
    %v60 = vld [vmem:[#allocation5 + $0x10] sm:$0xff]
    %v61 = vld [vmem:[#allocation5 + $0x18] sm:$0xff]
    %v62 = vld [vmem:[#allocation5 + $0x20] sm:$0xff]
    %v63 = vld [vmem:[#allocation5 + $0x28] sm:$0xff]
    %v64 = vld [vmem:[#allocation5 + $0x30] sm:$0xff]
    %v65 = vld [vmem:[#allocation5 + $0x38] sm:$0xff]
    %v66 = vld [vmem:[#allocation5 + $0x40] sm:$0xff]
    %v67 = vld [vmem:[#allocation5 + $0x48] sm:$0xff]
    %v68 = vld [vmem:[#allocation5 + $0x50] sm:$0xff]
    %v69 = vld [vmem:[#allocation5 + $0x58] sm:$0xff]
    %v70 = vld [vmem:[#allocation5 + $0x60] sm:$0xff]
    %v71 = vld [vmem:[#allocation5 + $0x68] sm:$0xff]
    %v72 = vld [vmem:[#allocation5 + $0x70] sm:$0xff]
    %v73 = vld [vmem:[#allocation5 + $0x78] sm:$0xff]
    %v74 = vld [vmem:[#allocation7] sm:$0xff]
    %v75 = vld [vmem:[#allocation7 + $0x8] sm:$0xff]
    %v76 = vld [vmem:[#allocation7 + $0x10] sm:$0xff]
    %v77 = vld [vmem:[#allocation7 + $0x18] sm:$0xff]
    %v78 = vld [vmem:[#allocation7 + $0x20] sm:$0xff]
    %v79 = vld [vmem:[#allocation7 + $0x28] sm:$0xff]
    %v80 = vld [vmem:[#allocation7 + $0x30] sm:$0xff]
    %v81 = vld [vmem:[#allocation7 + $0x38] sm:$0xff]
    %v82 = vld [vmem:[#allocation7 + $0x40] sm:$0xff]
    %v83 = vld [vmem:[#allocation7 + $0x48] sm:$0xff]
    %v84 = vld [vmem:[#allocation7 + $0x50] sm:$0xff]
    %v85 = vld [vmem:[#allocation7 + $0x58] sm:$0xff]
    %v86 = vld [vmem:[#allocation7 + $0x60] sm:$0xff]
    %v87 = vld [vmem:[#allocation7 + $0x68] sm:$0xff]
    %v88 = vld [vmem:[#allocation7 + $0x70] sm:$0xff]
    %v89 = vld [vmem:[#allocation7 + $0x78] sm:$0xff]
    %v90 = vld [vmem:[%s3] sm:$0xf]
    %91 = vmatprep.subr.mxu0 0.0
    %92 = vmatpush1.msra.mxu0 %v58
    %93 = vmatprep.subr.mxu0 0.0
    %94 = vmatpush1.msra.mxu0 %v59
    %95 = vmatprep.subr.mxu0 0.0
    %96 = vmatpush1.msra.mxu0 %v60
    %97 = vmatprep.subr.mxu0 0.0
    %98 = vmatpush1.msra.mxu0 %v61
    %99 = vmatprep.subr.mxu0 0.0
    %100 = vmatpush1.msra.mxu0 %v62
    %101 = vmatprep.subr.mxu0 0.0
    %102 = vmatpush1.msra.mxu0 %v63
    %103 = vmatprep.subr.mxu0 0.0
    %104 = vmatpush1.msra.mxu0 %v64
    %105 = vmatprep.subr.mxu0 0.0
    %106 = vmatpush1.msra.mxu0 %v65
    %107 = vmatprep.subr.mxu0 0.0
    %108 = vmatpush1.msra.mxu0 %v66
    %109 = vmatprep.subr.mxu0 0.0
    %110 = vmatpush1.msra.mxu0 %v67
    %111 = vmatprep.subr.mxu0 0.0
    %112 = vmatpush1.msra.mxu0 %v68
    %113 = vmatprep.subr.mxu0 0.0
    %114 = vmatpush1.msra.mxu0 %v69
    %115 = vmatprep.subr.mxu0 0.0
    %116 = vmatpush1.msra.mxu0 %v70
    %117 = vmatprep.subr.mxu0 0.0
    %118 = vmatpush1.msra.mxu0 %v71
    %119 = vmatprep.subr.mxu0 0.0
    %120 = vmatpush1.msra.mxu0 %v72
    %121 = vmatprep.subr.mxu0 0.0
    %122 = vmatpush1.msra.mxu0 %v73
    %123 = vmatprep.subr.mxu0 0.0
    %124 = vmatpush1.msra.mxu0 0.0
    %125 = vmatprep.subr.mxu0 0.0
    %126 = vmatpush1.msra.mxu0 0.0
    %127 = vmatprep.subr.mxu0 0.0
    %128 = vmatpush1.msra.mxu0 0.0
    %129 = vmatprep.subr.mxu0 0.0
    %130 = vmatpush1.msra.mxu0 0.0
    %131 = vmatprep.subr.mxu0 0.0
    %132 = vmatpush1.msra.mxu0 0.0
    %133 = vmatprep.subr.mxu0 0.0
    %134 = vmatpush1.msra.mxu0 0.0
    %135 = vmatprep.subr.mxu0 0.0
    %136 = vmatpush1.msra.mxu0 0.0
    %137 = vmatprep.subr.mxu0 0.0
    %138 = vmatpush1.msra.mxu0 0.0
    %139 = vmatprep.subr.mxu0 0.0
    %140 = vmatpush1.msra.mxu0 0.0
    %141 = vmatprep.subr.mxu0 0.0
    %142 = vmatpush1.msra.mxu0 0.0
    %143 = vmatprep.subr.mxu0 0.0
    %144 = vmatpush1.msra.mxu0 0.0
    %145 = vmatprep.subr.mxu0 0.0
    %146 = vmatpush1.msra.mxu0 0.0
    %147 = vmatprep.subr.mxu0 0.0
    %148 = vmatpush1.msra.mxu0 0.0
    %149 = vmatprep.subr.mxu0 0.0
    %150 = vmatpush1.msra.mxu0 0.0
    %151 = vmatprep.subr.mxu0 0.0
    %152 = vmatpush1.msra.mxu0 0.0
    %153 = vmatprep.subr.mxu0 0.0
    %154 = vmatpush1.msra.mxu0 0.0
    %155 = vmatprep.mubr.f32.mxu0 0.0
    %156 = vmatmul.mubr.f32.gmra.mrb[0].mxu0 %v57
    %v157 = vpop.f32.mrb[0].mxu0
    %v158 = vadd.f32 0.0, %v157
    %v159 = vpop.f32.mrb[0].mxu0
    %160 = vdwg.mxu0
    %161 = vmatprep.subr.mxu0 0.0
    %162 = vmatpush1.msra.mxu0 %v74
    %163 = vmatprep.subr.mxu0 0.0
    %164 = vmatpush1.msra.mxu0 %v75
    %165 = vmatprep.subr.mxu0 0.0
    %166 = vmatpush1.msra.mxu0 %v76
    %167 = vmatprep.subr.mxu0 0.0
    %168 = vmatpush1.msra.mxu0 %v77
    %169 = vmatprep.subr.mxu0 0.0
    %170 = vmatpush1.msra.mxu0 %v78
    %171 = vmatprep.subr.mxu0 0.0
    %172 = vmatpush1.msra.mxu0 %v79
    %173 = vmatprep.subr.mxu0 0.0
    %174 = vmatpush1.msra.mxu0 %v80
    %175 = vmatprep.subr.mxu0 0.0
    %176 = vmatpush1.msra.mxu0 %v81
    %177 = vmatprep.subr.mxu0 0.0
    %178 = vmatpush1.msra.mxu0 %v82
    %179 = vmatprep.subr.mxu0 0.0
    %180 = vmatpush1.msra.mxu0 %v83
    %181 = vmatprep.subr.mxu0 0.0
    %182 = vmatpush1.msra.mxu0 %v84
    %183 = vmatprep.subr.mxu0 0.0
    %184 = vmatpush1.msra.mxu0 %v85
    %185 = vmatprep.subr.mxu0 0.0
    %186 = vmatpush1.msra.mxu0 %v86
    %187 = vmatprep.subr.mxu0 0.0
    %188 = vmatpush1.msra.mxu0 %v87
    %189 = vmatprep.subr.mxu0 0.0
    %190 = vmatpush1.msra.mxu0 %v88
    %191 = vmatprep.subr.mxu0 0.0
    %192 = vmatpush1.msra.mxu0 %v89
    %193 = vmatprep.subr.mxu0 0.0
    %194 = vmatpush1.msra.mxu0 0.0
    %195 = vmatprep.subr.mxu0 0.0
    %196 = vmatpush1.msra.mxu0 0.0
    %197 = vmatprep.subr.mxu0 0.0
    %198 = vmatpush1.msra.mxu0 0.0
    %199 = vmatprep.subr.mxu0 0.0
    %200 = vmatpush1.msra.mxu0 0.0
    %201 = vmatprep.subr.mxu0 0.0
    %202 = vmatpush1.msra.mxu0 0.0
    %203 = vmatprep.subr.mxu0 0.0
    %204 = vmatpush1.msra.mxu0 0.0
    %205 = vmatprep.subr.mxu0 0.0
    %206 = vmatpush1.msra.mxu0 0.0
    %207 = vmatprep.subr.mxu0 0.0
    %208 = vmatpush1.msra.mxu0 0.0
    %209 = vmatprep.subr.mxu0 0.0
    %210 = vmatpush1.msra.mxu0 0.0
    %211 = vmatprep.subr.mxu0 0.0
    %212 = vmatpush1.msra.mxu0 0.0
    %213 = vmatprep.subr.mxu0 0.0
    %214 = vmatpush1.msra.mxu0 0.0
    %215 = vmatprep.subr.mxu0 0.0
    %216 = vmatpush1.msra.mxu0 0.0
    %217 = vmatprep.subr.mxu0 0.0
    %218 = vmatpush1.msra.mxu0 0.0
    %219 = vmatprep.subr.mxu0 0.0
    %220 = vmatpush1.msra.mxu0 0.0
    %221 = vmatprep.subr.mxu0 0.0
    %222 = vmatpush1.msra.mxu0 0.0
    %223 = vmatprep.subr.mxu0 0.0
    %224 = vmatpush1.msra.mxu0 0.0
    %225 = vmatprep.mubr.f32.mxu0 0.0
    %226 = vmatmul.mubr.f32.gmra.mrb[0].mxu0 %v57
    %v227 = vpop.f32.mrb[0].mxu0
    %v228 = vadd.f32 0.0, %v227
    %v229 = vpop.f32.mrb[0].mxu0
    %230 = vdwg.mxu0
    %231 = vadd.xlane.f32.xlu0 %v57
    %v232 = vpop.xlane.xlu0 %231
    %v233 = vrcp.pop 128.0
    %v234 = vmul.f32 %v232, %v233
    %v235 = vsub.f32 %v57, %v234
    %v236 = vmul.f32 %v235, %v235
    %237 = vadd.xlane.f32.xlu0 %v236
    %v238 = vpop.xlane.xlu0 %237
    %v239 = vmul.f32 %v238, %v233
    %v240 = vadd.f32 %v239, 1e-05
    %v241 = vrsqrt.pop %v240
    %v242 = vmul.f32 %v235, %v241
    %v243 = vlaneseq
    %v244 = vshrl.u32 %v243, 7
    %v245 = vsub.s32 0, %v244
    %v246 = vrot.slane %v90, %v245
    %v247 = vmul.f32 %v242, %v246
    %v248 = vlaneseq
    %v249 = vshrl.u32 %v248, 7
    %v250 = vsub.s32 1, %v249
    %v251 = vrot.slane %v90, %v250
    %v252 = vadd.f32 %v247, %v251
    %v253 = vmul.f32 %v252, %v252
    %254 = vadd.xlane.f32.xlu0 %v253
    %v255 = vpop.xlane.xlu0 %254
    %v256 = vadd.f32 %v255, 1e-06
    %v257 = vrsqrt.pop %v256
    %v258 = vmul.f32 %v252, %v257
    %v259 = vand.u32 2147483647, %v258
    %v260 = vadd.f32 %v259, 1e-06
    %v261 = vmul.f32 %v252, %v260
    %v262 = vmul.f32 %v261, 8.838835
    %263 = vmatprep.subr.mxu0 0.0
    %264 = vmatpush1.xpose.msra.mxu0 %v228
    %265 = vmatprep.subr.mxu0 0.0
    %266 = vmatpush1.xpose.msra.mxu0 0.0
    %267 = vmatprep.subr.mxu0 0.0
    %268 = vmatpush1.xpose.msra.mxu0 0.0
    %269 = vmatprep.subr.mxu0 0.0
    %270 = vmatpush1.xpose.msra.mxu0 0.0
    %271 = vmatprep.subr.mxu0 0.0
    %272 = vmatpush1.xpose.msra.mxu0 0.0
    %273 = vmatprep.subr.mxu0 0.0
    %274 = vmatpush1.xpose.msra.mxu0 0.0
    %275 = vmatprep.subr.mxu0 0.0
    %276 = vmatpush1.xpose.msra.mxu0 0.0
    %277 = vmatprep.subr.mxu0 0.0
    %278 = vmatpush1.xpose.msra.mxu0 0.0
    %279 = vmatprep.subr.mxu0 0.0
    %280 = vmatpush1.xpose.msra.mxu0 0.0
    %281 = vmatprep.subr.mxu0 0.0
    %282 = vmatpush1.xpose.msra.mxu0 0.0
    %283 = vmatprep.subr.mxu0 0.0
    %284 = vmatpush1.xpose.msra.mxu0 0.0
    %285 = vmatprep.subr.mxu0 0.0
    %286 = vmatpush1.xpose.msra.mxu0 0.0
    %287 = vmatprep.subr.mxu0 0.0
    %288 = vmatpush1.xpose.msra.mxu0 0.0
    %289 = vmatprep.subr.mxu0 0.0
    %290 = vmatpush1.xpose.msra.mxu0 0.0
    %291 = vmatprep.subr.mxu0 0.0
    %292 = vmatpush1.xpose.msra.mxu0 0.0
    %293 = vmatprep.subr.mxu0 0.0
    %294 = vmatpush1.xpose.msra.mxu0 0.0
    %295 = vmatprep.subr.mxu0 0.0
    %296 = vmatpush1.xpose.msra.mxu0 0.0
    %297 = vmatprep.subr.mxu0 0.0
    %298 = vmatpush1.xpose.msra.mxu0 0.0
    %299 = vmatprep.subr.mxu0 0.0
    %300 = vmatpush1.xpose.msra.mxu0 0.0
    %301 = vmatprep.subr.mxu0 0.0
    %302 = vmatpush1.xpose.msra.mxu0 0.0
    %303 = vmatprep.subr.mxu0 0.0
    %304 = vmatpush1.xpose.msra.mxu0 0.0
    %305 = vmatprep.subr.mxu0 0.0
    %306 = vmatpush1.xpose.msra.mxu0 0.0
    %307 = vmatprep.subr.mxu0 0.0
    %308 = vmatpush1.xpose.msra.mxu0 0.0
    %309 = vmatprep.subr.mxu0 0.0
    %310 = vmatpush1.xpose.msra.mxu0 0.0
    %311 = vmatprep.subr.mxu0 0.0
    %312 = vmatpush1.xpose.msra.mxu0 0.0
    %313 = vmatprep.subr.mxu0 0.0
    %314 = vmatpush1.xpose.msra.mxu0 0.0
    %315 = vmatprep.subr.mxu0 0.0
    %316 = vmatpush1.xpose.msra.mxu0 0.0
    %317 = vmatprep.subr.mxu0 0.0
    %318 = vmatpush1.xpose.msra.mxu0 0.0
    %319 = vmatprep.subr.mxu0 0.0
    %320 = vmatpush1.xpose.msra.mxu0 0.0
    %321 = vmatprep.subr.mxu0 0.0
    %322 = vmatpush1.xpose.msra.mxu0 0.0
    %323 = vmatprep.subr.mxu0 0.0
    %324 = vmatpush1.xpose.msra.mxu0 0.0
    %325 = vmatprep.subr.mxu0 0.0
    %326 = vmatpush1.xpose.msra.mxu0 0.0
    %327 = vmatprep.mubr.f32.mxu0 0.0
    %328 = vmatmul.mubr.f32.gmra.mrb[0].mxu0 %v158
    %v329 = vpop.f32.mrb[0].mxu0
    %v330 = vadd.f32 0.0, %v329
    %v331 = vpop.f32.mrb[0].mxu0
    %332 = vdwg.mxu0
    %vm333 = vcmask 64512
    %v334 = vsel %vm333, %v330, -inf
    %335 = vmax.xlane.f32.xlu0 %v334
    %v336 = vpop.xlane.xlu0 %335
    %v337 = vsub.f32 %v330, %v336
    %v338 = vmul.f32 %v337, 1.442695
    %v339 = vpow.pop %v338
    %v340 = vsel %vm333, %v339, 0.0
    %341 = vadd.xlane.f32.xlu0 %v340
    %v342 = vpop.xlane.xlu0 %341
    %v343 = vrcp.pop %v342
    %v344 = vmul.f32 %v339, %v343
    %v346 = vsel %vm333, %v344, 0
    %348 = vmatprep.subr.mxu0 0.0
    %349 = vmatpush1.msra.mxu0 %v262
    %350 = vmatprep.subr.mxu0 0.0
    %351 = vmatpush1.msra.mxu0 0.0
    %352 = vmatprep.subr.mxu0 0.0
    %353 = vmatpush1.msra.mxu0 0.0
    %354 = vmatprep.subr.mxu0 0.0
    %355 = vmatpush1.msra.mxu0 0.0
    %356 = vmatprep.subr.mxu0 0.0
    %357 = vmatpush1.msra.mxu0 0.0
    %358 = vmatprep.subr.mxu0 0.0
    %359 = vmatpush1.msra.mxu0 0.0
    %360 = vmatprep.subr.mxu0 0.0
    %361 = vmatpush1.msra.mxu0 0.0
    %362 = vmatprep.subr.mxu0 0.0
    %363 = vmatpush1.msra.mxu0 0.0
    %364 = vmatprep.subr.mxu0 0.0
    %365 = vmatpush1.msra.mxu0 0.0
    %366 = vmatprep.subr.mxu0 0.0
    %367 = vmatpush1.msra.mxu0 0.0
    %368 = vmatprep.subr.mxu0 0.0
    %369 = vmatpush1.msra.mxu0 0.0
    %370 = vmatprep.subr.mxu0 0.0
    %371 = vmatpush1.msra.mxu0 0.0
    %372 = vmatprep.subr.mxu0 0.0
    %373 = vmatpush1.msra.mxu0 0.0
    %374 = vmatprep.subr.mxu0 0.0
    %375 = vmatpush1.msra.mxu0 0.0
    %376 = vmatprep.subr.mxu0 0.0
    %377 = vmatpush1.msra.mxu0 0.0
    %378 = vmatprep.subr.mxu0 0.0
    %379 = vmatpush1.msra.mxu0 0.0
    %380 = vmatprep.subr.mxu0 0.0
    %381 = vmatpush1.msra.mxu0 0.0
    %382 = vmatprep.subr.mxu0 0.0
    %383 = vmatpush1.msra.mxu0 0.0
    %384 = vmatprep.subr.mxu0 0.0
    %385 = vmatpush1.msra.mxu0 0.0
    %386 = vmatprep.subr.mxu0 0.0
    %387 = vmatpush1.msra.mxu0 0.0
    %388 = vmatprep.subr.mxu0 0.0
    %389 = vmatpush1.msra.mxu0 0.0
    %390 = vmatprep.subr.mxu0 0.0
    %391 = vmatpush1.msra.mxu0 0.0
    %392 = vmatprep.subr.mxu0 0.0
    %393 = vmatpush1.msra.mxu0 0.0
    %394 = vmatprep.subr.mxu0 0.0
    %395 = vmatpush1.msra.mxu0 0.0
    %396 = vmatprep.subr.mxu0 0.0
    %397 = vmatpush1.msra.mxu0 0.0
    %398 = vmatprep.subr.mxu0 0.0
    %399 = vmatpush1.msra.mxu0 0.0
    %400 = vmatprep.subr.mxu0 0.0
    %401 = vmatpush1.msra.mxu0 0.0
    %402 = vmatprep.subr.mxu0 0.0
    %403 = vmatpush1.msra.mxu0 0.0
    %404 = vmatprep.subr.mxu0 0.0
    %405 = vmatpush1.msra.mxu0 0.0
    %406 = vmatprep.subr.mxu0 0.0
    %407 = vmatpush1.msra.mxu0 0.0
    %408 = vmatprep.subr.mxu0 0.0
    %409 = vmatpush1.msra.mxu0 0.0
    %410 = vmatprep.subr.mxu0 0.0
    %411 = vmatpush1.msra.mxu0 0.0
    %412 = vmatprep.mubr.f32.mxu0 0.0
    %413 = vmatmul.mubr.f32.gmra.mrb[0].mxu0 %v346
    %v414 = vpop.f32.mrb[0].mxu0
    %v415 = vadd.f32 0.0, %v414
    %v416 = vpop.f32.mrb[0].mxu0
    %417 = vdwg.mxu0
    %418 = vadd.xlane.f32.xlu0 %v415
    %v419 = vpop.xlane.xlu0 %418
    %v420 = vmul.f32 %v419, %v233
    %v421 = vsub.f32 %v415, %v420
    %v422 = vmul.f32 %v421, %v421
    %423 = vadd.xlane.f32.xlu0 %v422
    %v424 = vpop.xlane.xlu0 %423
    %v425 = vmul.f32 %v424, %v233
    %v426 = vadd.f32 %v425, 1e-05
    %v427 = vrsqrt.pop %v426
    %v428 = vmul.f32 %v421, %v427
    %v429 = vlaneseq
    %v430 = vshrl.u32 %v429, 7
    %v431 = vsub.s32 2, %v430
    %v432 = vrot.slane %v90, %v431
    %v433 = vmul.f32 %v428, %v432
    %v434 = vlaneseq
    %v435 = vshrl.u32 %v434, 7
    %v436 = vsub.s32 3, %v435
    %v437 = vrot.slane %v90, %v436
    %v438 = vadd.f32 %v433, %v437
    %v439 = vmul.f32 %v438, %v438
    %440 = vadd.xlane.f32.xlu0 %v439
    %v441 = vpop.xlane.xlu0 %440
    %v442 = vadd.f32 %v441, 1e-06
    %v443 = vrsqrt.pop %v442
    %v444 = vmul.f32 %v438, %v443
    %v445 = vand.u32 2147483647, %v444
    %v446 = vadd.f32 %v445, 1e-06
    %v447 = vmul.f32 %v438, %v446
    %v448 = vmul.f32 %v447, 8.838835
    %449 = vmatprep.subr.mxu0 0.0
    %450 = vmatpush1.xpose.msra.mxu0 %v415
    %451 = vmatprep.subr.mxu0 0.0
    %452 = vmatpush1.xpose.msra.mxu0 0.0
    %453 = vmatprep.subr.mxu0 0.0
    %454 = vmatpush1.xpose.msra.mxu0 0.0
    %455 = vmatprep.subr.mxu0 0.0
    %456 = vmatpush1.xpose.msra.mxu0 0.0
    %457 = vmatprep.subr.mxu0 0.0
    %458 = vmatpush1.xpose.msra.mxu0 0.0
    %459 = vmatprep.subr.mxu0 0.0
    %460 = vmatpush1.xpose.msra.mxu0 0.0
    %461 = vmatprep.subr.mxu0 0.0
    %462 = vmatpush1.xpose.msra.mxu0 0.0
    %463 = vmatprep.subr.mxu0 0.0
    %464 = vmatpush1.xpose.msra.mxu0 0.0
    %465 = vmatprep.subr.mxu0 0.0
    %466 = vmatpush1.xpose.msra.mxu0 0.0
    %467 = vmatprep.subr.mxu0 0.0
    %468 = vmatpush1.xpose.msra.mxu0 0.0
    %469 = vmatprep.subr.mxu0 0.0
    %470 = vmatpush1.xpose.msra.mxu0 0.0
    %471 = vmatprep.subr.mxu0 0.0
    %472 = vmatpush1.xpose.msra.mxu0 0.0
    %473 = vmatprep.subr.mxu0 0.0
    %474 = vmatpush1.xpose.msra.mxu0 0.0
    %475 = vmatprep.subr.mxu0 0.0
    %476 = vmatpush1.xpose.msra.mxu0 0.0
    %477 = vmatprep.subr.mxu0 0.0
    %478 = vmatpush1.xpose.msra.mxu0 0.0
    %479 = vmatprep.subr.mxu0 0.0
    %480 = vmatpush1.xpose.msra.mxu0 0.0
    %481 = vmatprep.subr.mxu0 0.0
    %482 = vmatpush1.xpose.msra.mxu0 0.0
    %483 = vmatprep.subr.mxu0 0.0
    %484 = vmatpush1.xpose.msra.mxu0 0.0
    %485 = vmatprep.subr.mxu0 0.0
    %486 = vmatpush1.xpose.msra.mxu0 0.0
    %487 = vmatprep.subr.mxu0 0.0
    %488 = vmatpush1.xpose.msra.mxu0 0.0
    %489 = vmatprep.subr.mxu0 0.0
    %490 = vmatpush1.xpose.msra.mxu0 0.0
    %491 = vmatprep.subr.mxu0 0.0
    %492 = vmatpush1.xpose.msra.mxu0 0.0
    %493 = vmatprep.subr.mxu0 0.0
    %494 = vmatpush1.xpose.msra.mxu0 0.0
    %495 = vmatprep.subr.mxu0 0.0
    %496 = vmatpush1.xpose.msra.mxu0 0.0
    %497 = vmatprep.subr.mxu0 0.0
    %498 = vmatpush1.xpose.msra.mxu0 0.0
    %499 = vmatprep.subr.mxu0 0.0
    %500 = vmatpush1.xpose.msra.mxu0 0.0
    %501 = vmatprep.subr.mxu0 0.0
    %502 = vmatpush1.xpose.msra.mxu0 0.0
    %503 = vmatprep.subr.mxu0 0.0
    %504 = vmatpush1.xpose.msra.mxu0 0.0
    %505 = vmatprep.subr.mxu0 0.0
    %506 = vmatpush1.xpose.msra.mxu0 0.0
    %507 = vmatprep.subr.mxu0 0.0
    %508 = vmatpush1.xpose.msra.mxu0 0.0
    %509 = vmatprep.subr.mxu0 0.0
    %510 = vmatpush1.xpose.msra.mxu0 0.0
    %511 = vmatprep.subr.mxu0 0.0
    %512 = vmatpush1.xpose.msra.mxu0 0.0
    %513 = vmatprep.mubr.f32.mxu0 0.0
    %514 = vmatmul.mubr.f32.gmra.mrb[0].mxu0 %v448
    %v515 = vpop.f32.mrb[0].mxu0
    %v516 = vadd.f32 0.0, %v515
    %v517 = vpop.f32.mrb[0].mxu0
    %518 = vdwg.mxu0
    %v520 = vsel %vm333, %v516, 0
    %522 = vmatprep.subr.mxu0 0.0
    %523 = vmatpush1.msra.mxu0 %v57
    %524 = vmatprep.subr.mxu0 0.0
    %525 = vmatpush1.msra.mxu0 0.0
    %526 = vmatprep.subr.mxu0 0.0
    %527 = vmatpush1.msra.mxu0 0.0
    %528 = vmatprep.subr.mxu0 0.0
    %529 = vmatpush1.msra.mxu0 0.0
    %530 = vmatprep.subr.mxu0 0.0
    %531 = vmatpush1.msra.mxu0 0.0
    %532 = vmatprep.subr.mxu0 0.0
    %533 = vmatpush1.msra.mxu0 0.0
    %534 = vmatprep.subr.mxu0 0.0
    %535 = vmatpush1.msra.mxu0 0.0
    %536 = vmatprep.subr.mxu0 0.0
    %537 = vmatpush1.msra.mxu0 0.0
    %538 = vmatprep.subr.mxu0 0.0
    %539 = vmatpush1.msra.mxu0 0.0
    %540 = vmatprep.subr.mxu0 0.0
    %541 = vmatpush1.msra.mxu0 0.0
    %542 = vmatprep.subr.mxu0 0.0
    %543 = vmatpush1.msra.mxu0 0.0
    %544 = vmatprep.subr.mxu0 0.0
    %545 = vmatpush1.msra.mxu0 0.0
    %546 = vmatprep.subr.mxu0 0.0
    %547 = vmatpush1.msra.mxu0 0.0
    %548 = vmatprep.subr.mxu0 0.0
    %549 = vmatpush1.msra.mxu0 0.0
    %550 = vmatprep.subr.mxu0 0.0
    %551 = vmatpush1.msra.mxu0 0.0
    %552 = vmatprep.subr.mxu0 0.0
    %553 = vmatpush1.msra.mxu0 0.0
    %554 = vmatprep.subr.mxu0 0.0
    %555 = vmatpush1.msra.mxu0 0.0
    %556 = vmatprep.subr.mxu0 0.0
    %557 = vmatpush1.msra.mxu0 0.0
    %558 = vmatprep.subr.mxu0 0.0
    %559 = vmatpush1.msra.mxu0 0.0
    %560 = vmatprep.subr.mxu0 0.0
    %561 = vmatpush1.msra.mxu0 0.0
    %562 = vmatprep.subr.mxu0 0.0
    %563 = vmatpush1.msra.mxu0 0.0
    %564 = vmatprep.subr.mxu0 0.0
    %565 = vmatpush1.msra.mxu0 0.0
    %566 = vmatprep.subr.mxu0 0.0
    %567 = vmatpush1.msra.mxu0 0.0
    %568 = vmatprep.subr.mxu0 0.0
    %569 = vmatpush1.msra.mxu0 0.0
    %570 = vmatprep.subr.mxu0 0.0
    %571 = vmatpush1.msra.mxu0 0.0
    %572 = vmatprep.subr.mxu0 0.0
    %573 = vmatpush1.msra.mxu0 0.0
    %574 = vmatprep.subr.mxu0 0.0
    %575 = vmatpush1.msra.mxu0 0.0
    %576 = vmatprep.subr.mxu0 0.0
    %577 = vmatpush1.msra.mxu0 0.0
    %578 = vmatprep.subr.mxu0 0.0
    %579 = vmatpush1.msra.mxu0 0.0
    %580 = vmatprep.subr.mxu0 0.0
    %581 = vmatpush1.msra.mxu0 0.0
    %582 = vmatprep.subr.mxu0 0.0
    %583 = vmatpush1.msra.mxu0 0.0
    %584 = vmatprep.subr.mxu0 0.0
    %585 = vmatpush1.msra.mxu0 0.0
    %586 = vmatprep.mubr.f32.mxu0 0.0
    %587 = vmatmul.mubr.f32.gmra.mrb[0].mxu0 %v520
    %v588 = vpop.f32.mrb[0].mxu0
    %v589 = vadd.f32 0.0, %v588
    %v590 = vpop.f32.mrb[0].mxu0
    %591 = vdwg.mxu0
    %v592 = vmul.f32 %v589, %v589
    %593 = vadd.xlane.f32.xlu0 %v592
    %v594 = vpop.xlane.xlu0 %593
    %v595 = vadd.f32 %v594, 1e-06
    %v596 = vrsqrt.pop %v595
    %v597 = vmul.f32 %v589, %v596
    %v598 = vand.u32 2147483647, %v597
    %v599 = vadd.f32 %v598, 1e-06
    %600 = vst [vmem:[#allocation8] sm:$0xff] %v599
    // Predicated region
    $region30: #{tpu_custom_call.1} parent=1 // pred_check
      _
    $region31: #{tpu_custom_call.1} parent=1 // pred_check_branch
      %602 = sbr.rel (0) target = $region33
    $region32: #{tpu_custom_call.1} parent=1 // pred_region
      %s604 = ssub.s32 128, 128
      %605 = vsyncadd [#allocation4], %s604
      %s607 = sshll.u32 [#allocation8], 4
      %s608 = int_to_ptr.vmem [resolvable:$true] %s607
      %610 = dma.vmem_to_hbm [thread:$0]  %s608, 128, %s4, [#allocation4]
    $region33: #{tpu_custom_call.1} parent=1 // pred_fallthru
      _
    // Predicated region
    $region34: #{tpu_custom_call.1} parent=1 // pred_check
      _
    $region35: #{tpu_custom_call.1} parent=1 // pred_check_branch
      %612 = sbr.rel (0) target = $region37
    $region36: #{tpu_custom_call.1} parent=1 // pred_region
      %613 = dma.done [#allocation4], 128
    $region37: #{tpu_custom_call.1} parent=1 // pred_fallthru
      _
    %614 = vsyncpa [#allocation3], 1
    %615 = vsyncpa [#allocation6], 1
    %616 = vsyncpa [#allocation4], 1

</llo_original>
